<compile_context>
chip_gen: v7x
topology: tpu7x:2x2x1
jax: 0.10.0
libtpu: 0.0.40
codegen_flags: <defaults>
</compile_context>

<pallas_src>
import jax
import jax.numpy as jnp
from jax.experimental import pallas as pl
from jax.experimental.pallas import tpu as pltpu

STATE_DIM = 4        # small synthetic state dim
ACTION_DIM = 2       # small synthetic action dim
IN_PAD = 8           # padded (state_dim + action_dim + bias col + pad)
BIAS_COL = STATE_DIM + ACTION_DIM   # x[:, 6] == 1 -> folded layer-1 bias
H1 = 125             # fc1 / fa1 true output width
H2 = 250             # fca1 true width
OUT = 1              # fca2 width
H1P = 128            # padded per-branch width
D = 256              # padded hidden width (2 * H1P == padded H2); lane 255 = bias carrier
TB_MAX = 1024        # batch tile cap (working set ~few MB << VMEM on all gens)
BIAS = 0.01


def _round_up(x, m):
    return ((x + m - 1) // m) * m


def _choose_tiling(batch):
    """Balanced batch tiling: small padding, >=2 tiles for v7x megacore."""
    num_tiles = max(pl.cdiv(batch, TB_MAX), 1)
    if batch >= 256 and num_tiles < 2:
        num_tiles = 2          # shard the "parallel" axis across both v7x TCs
    tb = _round_up(pl.cdiv(batch, num_tiles), 8)
    return num_tiles, tb


def critic_kernel(x_ref, w_in_ref, w2_ref, w3_ref, out_ref):
    # Layer 1 (fused fc1 || fa1, block-diagonal weight, bias folded into the
    # x[:,6]==1 column): (TB,8)bf16 @ (8,256)bf16 -> f32 accumulate.
    h1 = jnp.dot(x_ref[...], w_in_ref[...], preferred_element_type=jnp.float32)
    h1 = jnp.maximum(h1, 0.0).astype(jnp.bfloat16)   # ReLU in f32, bf16 for MXU

    # Layer 2 (fca1, bias folded into row 255 via the lane-255 carrier):
    # (TB,256)bf16 @ (256,256)bf16 -> f32 accumulate.
    h2 = jnp.dot(h1, w2_ref[...], preferred_element_type=jnp.float32)
    h2 = jnp.maximum(h2, 0.0)

    # Layer 3 (fca2, N=1, bias in w3[0,255]): VPU multiply + lane reduction
    # instead of a near-empty MXU push; f32 VPU (v5e has no bf16 VALU).
    v = jnp.sum(h2 * w3_ref[...].astype(jnp.float32), axis=-1)   # (TB,)
    out_ref[...] = v[None, :]                                    # lane-dense (1, TB)


@jax.jit
def critic_forward(state, action, params):
    w_in, w2, w3 = params
    B = state.shape[0]
    num_tiles, TB = _choose_tiling(B)
    Bp = num_tiles * TB

    # Fused input  [state | action | 1 (bias col) | 0 pad]  -> (B, 8) bf16,
    # built with a single concatenate; batch zero-padded to Bp in one pad.
    x = jnp.concatenate(
        [state.astype(jnp.float32),
         action.astype(jnp.float32),
         jnp.ones((B, 1), jnp.float32),
         jnp.zeros((B, IN_PAD - STATE_DIM - ACTION_DIM - 1), jnp.float32)],
        axis=-1).astype(jnp.bfloat16)
    if Bp != B:
        x = jnp.pad(x, ((0, Bp - B), (0, 0)))

    const = lambda shape: pl.BlockSpec(shape, lambda i: (0, 0))
    in_specs = [
        pl.BlockSpec((TB, IN_PAD), lambda i: (i, 0)),   # fused input, batch-tiled
        const((IN_PAD, D)),                             # block-diag layer-1 weight (bf16)
        const((D, D)),                                  # layer-2 weight (bf16)
        const((1, D)),                                  # layer-3 weight row (bf16)
    ]
    # Lane-dense output: one (1, TB) row per tile.
    out_specs = pl.BlockSpec((1, TB), lambda i: (i, 0))

    out = pl.pallas_call(
        critic_kernel,
        out_shape=jax.ShapeDtypeStruct((num_tiles, TB), jnp.float32),
        grid=(num_tiles,),
        in_specs=in_specs,
        out_specs=out_specs,
        compiler_params=pltpu.CompilerParams(
            dimension_semantics=("parallel",)),
    )(x, w_in, w2, w3)

    return out.reshape(Bp, 1)[:B]


def xavier_uniform(key, fan_in, fan_out):
    # PyTorch xavier_uniform_: U(-a, a), a = sqrt(6 / (fan_in + fan_out)).
    # Stored as (in, out) so forward computes x @ W (== x @ W_torch.T).
    bound = (6.0 / (fan_in + fan_out)) ** 0.5
    return jax.random.uniform(key, (fan_in, fan_out), jnp.float32,
                              minval=-bound, maxval=bound)


def init_params(key):
    """Returns (raw_f32_params, padded_bf16_kernel_params)."""
    k1, k2, k3, k4 = jax.random.split(key, 4)
    w1 = xavier_uniform(k1, STATE_DIM, H1)      # fc1.weight.T   (4, 125)
    wa = xavier_uniform(k2, ACTION_DIM, H1)     # fa1.weight.T   (2, 125)
    w2 = xavier_uniform(k3, H2, H2)             # fca1.weight.T  (250, 250)
    w3 = xavier_uniform(k4, H2, OUT)            # fca2.weight.T  (250, 1)
    raw = (w1, wa, w2, w3)

    # Layer 1: block-diagonal [[W1, 0], [0, Wa]] -> (8, 256); bias folded into
    # row BIAS_COL (x[:,BIAS_COL]==1).  Column 255 is the bias-carrier lane
    # (h1[:,255] == 1); padded lanes 125-127 / 253-254 have zero weight and
    # zero bias so they stay exactly 0 through the ReLUs.
    w_in = jnp.zeros((IN_PAD, D), jnp.float32)
    w_in = w_in.at[:STATE_DIM, :H1].set(w1)
    w_in = w_in.at[STATE_DIM:STATE_DIM + ACTION_DIM, H1P:H1P + H1].set(wa)
    w_in = w_in.at[BIAS_COL, :H1].set(BIAS)
    w_in = w_in.at[BIAS_COL, H1P:H1P + H1].set(BIAS)
    w_in = w_in.at[BIAS_COL, D - 1].set(1.0)

    # Layer 2: rows 0..124 take the xs half, rows 128..252 the xa half; bias
    # folded into row 255 (the carrier); w2p[255,255]=1 keeps h2[:,255]==1.
    w2p = jnp.zeros((D, D), jnp.float32)
    w2p = w2p.at[:H1, :H2].set(w2[:H1, :])
    w2p = w2p.at[H1P:H1P + H1, :H2].set(w2[H1:, :])
    w2p = w2p.at[D - 1, :H2].set(BIAS)
    w2p = w2p.at[D - 1, D - 1].set(1.0)

    # Layer 3 as a broadcast row (1, 256); bias in the carrier lane 255.
    w3p = jnp.zeros((1, D), jnp.float32)
    w3p = w3p.at[0, :H2].set(w3[:, 0])
    w3p = w3p.at[0, D - 1].set(BIAS)

    padded = (w_in.astype(jnp.bfloat16),
              w2p.astype(jnp.bfloat16),
              w3p.astype(jnp.bfloat16))
    return raw, padded


def critic_reference(state, action, raw):
    """Pure-JAX f32 reference with the original (un-padded) layer structure."""
    w1, wa, w2, w3 = raw
    xs = jnp.maximum(state @ w1 + BIAS, 0.0)
    xa = jnp.maximum(action @ wa + BIAS, 0.0)
    x = jnp.concatenate([xs, xa], axis=-1)
    h = jnp.maximum(x @ w2 + BIAS, 0.0)
    return h @ w3 + BIAS


if __name__ == "__main__":
    key = jax.random.PRNGKey(0)
    kp, ks, ka = jax.random.split(key, 3)

    B = 8
    state = jax.random.normal(ks, (B, STATE_DIM), jnp.float32)
    action = jax.random.normal(ka, (B, ACTION_DIM), jnp.float32)
    raw, params = init_params(kp)

    out = critic_forward(state, action, params)
    out = jax.block_until_ready(out)

    ref = critic_reference(state, action, raw)
    assert out.shape == (B, OUT), out.shape
    # bf16 compute with f32 accumulation -> ~1e-2 relative tolerance.
    assert jnp.allclose(out, ref, atol=3e-2, rtol=3e-2), (
        float(jnp.max(jnp.abs(out - ref))))

    print("KERNEL_OK")
</pallas_src>

<mosaic_0001>
module attributes {stable_mosaic.version = 11 : i64} {
  func.func @critic_kernel(%arg0: i32, %arg1: memref<8x8xbf16, #tpu.memory_space<vmem>>, %arg2: memref<8x256xbf16, #tpu.memory_space<vmem>>, %arg3: memref<256x256xbf16, #tpu.memory_space<vmem>>, %arg4: memref<1x256xbf16, #tpu.memory_space<vmem>>, %arg5: memref<1x8xf32, #tpu.memory_space<vmem>>) attributes {dimension_semantics = [#tpu.dimension_semantics<parallel>], iteration_bounds = array<i64: 1>, scalar_prefetch = 0 : i64, scratch_operands = 0 : i64, tpu.core_type = #tpu.core_type<tc>, window_params = [{transform_indices = @transform_0, window_bounds = array<i64: 8, 8>}, {pipeline_mode = #tpu.pipeline_mode<synchronous>, transform_indices = @transform_1, window_bounds = array<i64: 8, 256>}, {pipeline_mode = #tpu.pipeline_mode<synchronous>, transform_indices = @transform_2, window_bounds = array<i64: 256, 256>}, {pipeline_mode = #tpu.pipeline_mode<synchronous>, transform_indices = @transform_3, window_bounds = array<i64: 1, 256>}, {transform_indices = @transform_4, window_bounds = array<i64: 1, 8>}]} {
    %c0 = arith.constant 0 : index
    %c0_0 = arith.constant 0 : index
    %0 = vector.load %arg1[%c0, %c0_0] : memref<8x8xbf16, #tpu.memory_space<vmem>>, vector<8x8xbf16>
    %c0_1 = arith.constant 0 : index
    %c0_2 = arith.constant 0 : index
    %1 = vector.load %arg2[%c0_1, %c0_2] : memref<8x256xbf16, #tpu.memory_space<vmem>>, vector<8x256xbf16>
    %cst = arith.constant dense<0.000000e+00> : vector<8x256xf32>
    %2 = tpu.matmul %0, %1, %cst {dimension_numbers = #tpu.dot_dimension_numbers<[1], [0], [0], [1], [0, 0, 1, 1], [], []>} : vector<8x8xbf16>, vector<8x256xbf16>, vector<8x256xf32> -> vector<8x256xf32>
    %cst_3 = arith.constant 0.000000e+00 : f32
    %3 = vector.broadcast %cst_3 : f32 to vector<8x256xf32>
    %4 = arith.maximumf %2, %3 : vector<8x256xf32>
    %5 = arith.truncf %4 : vector<8x256xf32> to vector<8x256xbf16>
    %c0_4 = arith.constant 0 : index
    %c0_5 = arith.constant 0 : index
    %6 = vector.load %arg3[%c0_4, %c0_5] : memref<256x256xbf16, #tpu.memory_space<vmem>>, vector<256x256xbf16>
    %cst_6 = arith.constant dense<0.000000e+00> : vector<8x256xf32>
    %7 = tpu.matmul %5, %6, %cst_6 {dimension_numbers = #tpu.dot_dimension_numbers<[1], [0], [0], [1], [0, 0, 1, 1], [], []>} : vector<8x256xbf16>, vector<256x256xbf16>, vector<8x256xf32> -> vector<8x256xf32>
    %cst_7 = arith.constant 0.000000e+00 : f32
    %8 = vector.broadcast %cst_7 : f32 to vector<8x256xf32>
    %9 = arith.maximumf %7, %8 : vector<8x256xf32>
    %c0_8 = arith.constant 0 : index
    %c0_9 = arith.constant 0 : index
    %10 = vector.load %arg4[%c0_8, %c0_9] : memref<1x256xbf16, #tpu.memory_space<vmem>>, vector<1x256xbf16>
    %11 = arith.extf %10 : vector<1x256xbf16> to vector<1x256xf32>
    %12 = vector.broadcast %11 : vector<1x256xf32> to vector<8x256xf32>
    %13 = arith.mulf %9, %12 : vector<8x256xf32>
    %cst_10 = arith.constant dense<0.000000e+00> : vector<8xf32>
    %14 = vector.multi_reduction <add>, %13, %cst_10 [1] : vector<8x256xf32> to vector<8xf32>
    %15 = vector.shape_cast %14 : vector<8xf32> to vector<1x8xf32>
    %c0_11 = arith.constant 0 : index
    %c0_12 = arith.constant 0 : index
    %16 = vector.load %arg5[%c0_11, %c0_12] : memref<1x8xf32, #tpu.memory_space<vmem>>, vector<1x8xf32>
    tpu.vector_store %arg5[%c0_11, %c0_12], %15 {strides = array<i32>} : memref<1x8xf32, #tpu.memory_space<vmem>>, vector<1x8xf32>,
    return
  }
  func.func @transform_0(%arg0: i32) -> (i32, i32) {
    %c0_i32 = arith.constant 0 : i32
    %c0_i32_0 = arith.constant 0 : i32
    return %arg0, %c0_i32 : i32, i32
  }
  func.func @transform_1(%arg0: i32) -> (i32, i32) {
    %c0_i32 = arith.constant 0 : i32
    %c0_i32_0 = arith.constant 0 : i32
    %c0_i32_1 = arith.constant 0 : i32
    return %c0_i32, %c0_i32_0 : i32, i32
  }
  func.func @transform_2(%arg0: i32) -> (i32, i32) {
    %c0_i32 = arith.constant 0 : i32
    %c0_i32_0 = arith.constant 0 : i32
    %c0_i32_1 = arith.constant 0 : i32
    return %c0_i32, %c0_i32_0 : i32, i32
  }
  func.func @transform_3(%arg0: i32) -> (i32, i32) {
    %c0_i32 = arith.constant 0 : i32
    %c0_i32_0 = arith.constant 0 : i32
    %c0_i32_1 = arith.constant 0 : i32
    return %c0_i32, %c0_i32_0 : i32, i32
  }
  func.func @transform_4(%arg0: i32) -> (i32, i32) {
    %c0_i32 = arith.constant 0 : i32
    %c0_i32_0 = arith.constant 0 : i32
    return %arg0, %c0_i32 : i32, i32
  }
}

</mosaic_0001>

<llo_original>
// kernel: critic_forward.1
$region0: #{critic_forward.1}
  #allocation0 [shape = 'u32[]', space=smem, size = 0x4, offset = 0x4, fixed_abs, tag = 'smem constant byte address 0x4 - core index']
  #allocation1 [shape = 'u32[144,128]{1,0:T(1,128)}', space=vmem, size = 0x12000, scoped, tag = 'internal scratch']
  %s0 = inlined_call_operand.vmem [shape: bf16[8,8], index: 0, kind: input, shape index: {}]
  %s1 = inlined_call_operand.vmem [shape: bf16[8,256], index: 1, kind: input, shape index: {}]
  %s2 = inlined_call_operand.hbm [shape: bf16[256,256], index: 2, kind: input, shape index: {}]
  %s3 = inlined_call_operand.vmem [shape: bf16[1,256], index: 3, kind: input, shape index: {}]
  %s4 = inlined_call_operand.hbm [shape: f32[1,8], index: 4, kind: output, shape index: {}]
  %s5 = sld [smem:[#allocation0]]
  $region30: #{critic_forward.1} parent=0
    _
  %s7 = ssub.s32 1, %s5
  %s8 = scalar_select 0, %s7, %s5
  $region1: #{critic_forward.1} parent=0
    #allocation2 [shape = 'u8[131072]{0}', space=vmem, size = 0x20000, scoped, tag = 'input window, operand 2, single buffered']
    #allocation3 [shape = 's32[1]{0}', space=sflag, size = 0x4, scoped, tag = 'scoped memory for critic_forward.1']
    #allocation4 [shape = 's32[1]{0}', space=sflag, size = 0x4, scoped, tag = 'scoped memory for critic_forward.1']
    #allocation5 [shape = 'u8[512]{0}', space=vmem, size = 0x400, scoped, tag = 'output window, operand 0, single buffered']
    %9 = vsyncpa [#allocation3], 0
    %10 = vsyncpa [#allocation4], 0
    // Predicated region
    $region2: #{critic_forward.1} parent=1 // pred_check
      _
    $region3: #{critic_forward.1} parent=1 // pred_check_branch
      %12 = sbr.rel (0) target = $region5
    $region4: #{critic_forward.1} parent=1 // pred_region
      _
    $region5: #{critic_forward.1} parent=1 // pred_fallthru
      _
    // Predicated region
    $region6: #{critic_forward.1} parent=1 // pred_check
      _
    $region7: #{critic_forward.1} parent=1 // pred_check_branch
      %14 = sbr.rel (0) target = $region9
    $region8: #{critic_forward.1} parent=1 // pred_region
      _
    $region9: #{critic_forward.1} parent=1 // pred_fallthru
      _
    // Predicated region
    $region10: #{critic_forward.1} parent=1 // pred_check
      _
    $region11: #{critic_forward.1} parent=1 // pred_check_branch
      %16 = sbr.rel (0) target = $region13
    $region12: #{critic_forward.1} parent=1 // pred_region
      %s18 = ssub.s32 4096, 4096
      %19 = vsyncadd [#allocation3], %s18
      %s20 = sshll.u32 [#allocation2], 4
      %s21 = int_to_ptr.vmem [resolvable:$true] %s20
      %26 = dma.hbm_to_vmem [thread:$0]  %s2, 4096, %s21, [#allocation3], 128, 128, 8
    $region13: #{critic_forward.1} parent=1 // pred_fallthru
      _
    // Predicated region
    $region14: #{critic_forward.1} parent=1 // pred_check
      _
    $region15: #{critic_forward.1} parent=1 // pred_check_branch
      %28 = sbr.rel (0) target = $region17
    $region16: #{critic_forward.1} parent=1 // pred_region
      _
    $region17: #{critic_forward.1} parent=1 // pred_fallthru
      _
    // Predicated region
    $region18: #{critic_forward.1} parent=1 // pred_check
      _
    $region19: #{critic_forward.1} parent=1 // pred_check_branch
      %30 = sbr.rel (0) target = $region21
    $region20: #{critic_forward.1} parent=1 // pred_region
      %31 = dma.done [#allocation3], 4096
    $region21: #{critic_forward.1} parent=1 // pred_fallthru
      _
    %v33 = vld [vmem:[%s0] sm:$0xf]
    %v34 = vld [vmem:[%s1] sm:$0xff]
    %v36 = vunpack.c.l.b16 %v34
    %v37 = vunpack.c.h.b16 %v34
    %v38 = vpack.c.b16 %v36, %v36
    %v39 = vpack.c.b16 %v37, %v37
    %vm40 = vcmask 64512
    %v42 = vsel %vm40, %v33, 0
    %vm44 = vcmask 1043456
    %v46 = vsel %vm44, %v38, 0
    %v49 = vsel %vm44, %v39, 0
    %51 = vmatprep.subr.bf16.mxu0 %v49
    %52 = vmatpush1.bf16.msra.mxu0 %v46
    %53 = vmatprep.subr.bf16.mxu0 0
    %54 = vmatpush1.bf16.msra.mxu0 0
    %55 = vmatprep.subr.bf16.mxu0 0
    %56 = vmatpush1.bf16.msra.mxu0 0
    %57 = vmatprep.subr.bf16.mxu0 0
    %58 = vmatpush1.bf16.msra.mxu0 0
    %59 = vmatprep.subr.bf16.mxu0 0
    %60 = vmatpush1.bf16.msra.mxu0 0
    %61 = vmatprep.subr.bf16.mxu0 0
    %62 = vmatpush1.bf16.msra.mxu0 0
    %63 = vmatprep.subr.bf16.mxu0 0
    %64 = vmatpush1.bf16.msra.mxu0 0
    %65 = vmatprep.subr.bf16.mxu0 0
    %66 = vmatpush1.bf16.msra.mxu0 0
    %67 = vmatprep.subr.bf16.mxu0 0
    %68 = vmatpush1.bf16.msra.mxu0 0
    %69 = vmatprep.subr.bf16.mxu0 0
    %70 = vmatpush1.bf16.msra.mxu0 0
    %71 = vmatprep.subr.bf16.mxu0 0
    %72 = vmatpush1.bf16.msra.mxu0 0
    %73 = vmatprep.subr.bf16.mxu0 0
    %74 = vmatpush1.bf16.msra.mxu0 0
    %75 = vmatprep.subr.bf16.mxu0 0
    %76 = vmatpush1.bf16.msra.mxu0 0
    %77 = vmatprep.subr.bf16.mxu0 0
    %78 = vmatpush1.bf16.msra.mxu0 0
    %79 = vmatprep.subr.bf16.mxu0 0
    %80 = vmatpush1.bf16.msra.mxu0 0
    %81 = vmatprep.subr.bf16.mxu0 0
    %82 = vmatpush1.bf16.msra.mxu0 0
    %83 = vmatprep.mubr.bf16.mxu0 0
    %84 = vmatmul.mubr.bf16.gmra.mrb[0].mxu0 %v42
    %v85 = vpop.f32.mrb[0].mxu0
    %v86 = vadd.f32 0.0, %v85
    %v87 = vpop.f32.mrb[0].mxu0
    %v88 = vadd.f32 0.0, %v87
    %v89 = vpop.f32.mrb[0].mxu0
    %v90 = vpop.f32.mrb[0].mxu0
    %91 = vdwg.mxu0
    %v92 = vmax.f32 %v86, 0.0
    %v93 = vmax.f32 %v88, 0.0
    %v94 = vpack.c.bf16 %v92, %v92
    %v95 = vpack.c.bf16 %v93, %v93
    %v96 = vld [vmem:[#allocation2] sm:$0xff]
    %v97 = vld [vmem:[#allocation2 + $0x8] sm:$0xff]
    %v98 = vld [vmem:[#allocation2 + $0x10] sm:$0xff]
    %v99 = vld [vmem:[#allocation2 + $0x18] sm:$0xff]
    %v100 = vld [vmem:[#allocation2 + $0x20] sm:$0xff]
    %v101 = vld [vmem:[#allocation2 + $0x28] sm:$0xff]
    %v102 = vld [vmem:[#allocation2 + $0x30] sm:$0xff]
    %v103 = vld [vmem:[#allocation2 + $0x38] sm:$0xff]
    %v104 = vld [vmem:[#allocation2 + $0x40] sm:$0xff]
    %v105 = vld [vmem:[#allocation2 + $0x48] sm:$0xff]
    %v106 = vld [vmem:[#allocation2 + $0x50] sm:$0xff]
    %v107 = vld [vmem:[#allocation2 + $0x58] sm:$0xff]
    %v108 = vld [vmem:[#allocation2 + $0x60] sm:$0xff]
    %v109 = vld [vmem:[#allocation2 + $0x68] sm:$0xff]
    %v110 = vld [vmem:[#allocation2 + $0x70] sm:$0xff]
    %v111 = vld [vmem:[#allocation2 + $0x78] sm:$0xff]
    %v112 = vld [vmem:[#allocation2 + $0x80] sm:$0xff]
    %v113 = vld [vmem:[#allocation2 + $0x88] sm:$0xff]
    %v114 = vld [vmem:[#allocation2 + $0x90] sm:$0xff]
    %v115 = vld [vmem:[#allocation2 + $0x98] sm:$0xff]
    %v116 = vld [vmem:[#allocation2 + $0xa0] sm:$0xff]
    %v117 = vld [vmem:[#allocation2 + $0xa8] sm:$0xff]
    %v118 = vld [vmem:[#allocation2 + $0xb0] sm:$0xff]
    %v119 = vld [vmem:[#allocation2 + $0xb8] sm:$0xff]
    %v120 = vld [vmem:[#allocation2 + $0xc0] sm:$0xff]
    %v121 = vld [vmem:[#allocation2 + $0xc8] sm:$0xff]
    %v122 = vld [vmem:[#allocation2 + $0xd0] sm:$0xff]
    %v123 = vld [vmem:[#allocation2 + $0xd8] sm:$0xff]
    %v124 = vld [vmem:[#allocation2 + $0xe0] sm:$0xff]
    %v125 = vld [vmem:[#allocation2 + $0xe8] sm:$0xff]
    %v126 = vld [vmem:[#allocation2 + $0xf0] sm:$0xff]
    %v127 = vld [vmem:[#allocation2 + $0xf8] sm:$0xff]
    %v160 = vunpack.c.l.b16 %v96
    %v161 = vunpack.c.h.b16 %v96
    %v162 = vunpack.c.l.b16 %v97
    %v163 = vunpack.c.h.b16 %v97
    %v164 = vunpack.c.l.b16 %v98
    %v165 = vunpack.c.h.b16 %v98
    %v166 = vunpack.c.l.b16 %v99
    %v167 = vunpack.c.h.b16 %v99
    %v168 = vunpack.c.l.b16 %v100
    %v169 = vunpack.c.h.b16 %v100
    %v170 = vunpack.c.l.b16 %v101
    %v171 = vunpack.c.h.b16 %v101
    %v172 = vunpack.c.l.b16 %v102
    %v173 = vunpack.c.h.b16 %v102
    %v174 = vunpack.c.l.b16 %v103
    %v175 = vunpack.c.h.b16 %v103
    %v176 = vunpack.c.l.b16 %v104
    %v177 = vunpack.c.h.b16 %v104
    %v178 = vunpack.c.l.b16 %v105
    %v179 = vunpack.c.h.b16 %v105
    %v180 = vunpack.c.l.b16 %v106
    %v181 = vunpack.c.h.b16 %v106
    %v182 = vunpack.c.l.b16 %v107
    %v183 = vunpack.c.h.b16 %v107
    %v184 = vunpack.c.l.b16 %v108
    %v185 = vunpack.c.h.b16 %v108
    %v186 = vunpack.c.l.b16 %v109
    %v187 = vunpack.c.h.b16 %v109
    %v188 = vunpack.c.l.b16 %v110
    %v189 = vunpack.c.h.b16 %v110
    %v190 = vunpack.c.l.b16 %v111
    %v191 = vunpack.c.h.b16 %v111
    %v192 = vunpack.c.l.b16 %v112
    %v193 = vunpack.c.h.b16 %v112
    %v194 = vunpack.c.l.b16 %v113
    %v195 = vunpack.c.h.b16 %v113
    %v196 = vunpack.c.l.b16 %v114
    %v197 = vunpack.c.h.b16 %v114
    %v198 = vunpack.c.l.b16 %v115
    %v199 = vunpack.c.h.b16 %v115
    %v200 = vunpack.c.l.b16 %v116
    %v201 = vunpack.c.h.b16 %v116
    %v202 = vunpack.c.l.b16 %v117
    %v203 = vunpack.c.h.b16 %v117
    %v204 = vunpack.c.l.b16 %v118
    %v205 = vunpack.c.h.b16 %v118
    %v206 = vunpack.c.l.b16 %v119
    %v207 = vunpack.c.h.b16 %v119
    %v208 = vunpack.c.l.b16 %v120
    %v209 = vunpack.c.h.b16 %v120
    %v210 = vunpack.c.l.b16 %v121
    %v211 = vunpack.c.h.b16 %v121
    %v212 = vunpack.c.l.b16 %v122
    %v213 = vunpack.c.h.b16 %v122
    %v214 = vunpack.c.l.b16 %v123
    %v215 = vunpack.c.h.b16 %v123
    %v216 = vunpack.c.l.b16 %v124
    %v217 = vunpack.c.h.b16 %v124
    %v218 = vunpack.c.l.b16 %v125
    %v219 = vunpack.c.h.b16 %v125
    %v220 = vunpack.c.l.b16 %v126
    %v221 = vunpack.c.h.b16 %v126
    %v222 = vunpack.c.l.b16 %v127
    %v223 = vunpack.c.h.b16 %v127
    %v224 = vpack.c.b16 %v162, %v160
    %v225 = vpack.c.b16 %v163, %v161
    %v226 = vpack.c.b16 %v166, %v164
    %v227 = vpack.c.b16 %v167, %v165
    %v228 = vpack.c.b16 %v170, %v168
    %v229 = vpack.c.b16 %v171, %v169
    %v230 = vpack.c.b16 %v174, %v172
    %v231 = vpack.c.b16 %v175, %v173
    %v232 = vpack.c.b16 %v178, %v176
    %v233 = vpack.c.b16 %v179, %v177
    %v234 = vpack.c.b16 %v182, %v180
    %v235 = vpack.c.b16 %v183, %v181
    %v236 = vpack.c.b16 %v186, %v184
    %v237 = vpack.c.b16 %v187, %v185
    %v238 = vpack.c.b16 %v190, %v188
    %v239 = vpack.c.b16 %v191, %v189
    %v240 = vpack.c.b16 %v194, %v192
    %v241 = vpack.c.b16 %v195, %v193
    %v242 = vpack.c.b16 %v198, %v196
    %v243 = vpack.c.b16 %v199, %v197
    %v244 = vpack.c.b16 %v202, %v200
    %v245 = vpack.c.b16 %v203, %v201
    %v246 = vpack.c.b16 %v206, %v204
    %v247 = vpack.c.b16 %v207, %v205
    %v248 = vpack.c.b16 %v210, %v208
    %v249 = vpack.c.b16 %v211, %v209
    %v250 = vpack.c.b16 %v214, %v212
    %v251 = vpack.c.b16 %v215, %v213
    %v252 = vpack.c.b16 %v218, %v216
    %v253 = vpack.c.b16 %v219, %v217
    %v254 = vpack.c.b16 %v222, %v220
    %v255 = vpack.c.b16 %v223, %v221
    %288 = vmatprep.subr.bf16.mxu0 %v225
    %289 = vmatpush1.bf16.msra.mxu0 %v224
    %290 = vmatprep.subr.bf16.mxu0 %v227
    %291 = vmatpush1.bf16.msra.mxu0 %v226
    %292 = vmatprep.subr.bf16.mxu0 %v229
    %293 = vmatpush1.bf16.msra.mxu0 %v228
    %294 = vmatprep.subr.bf16.mxu0 %v231
    %295 = vmatpush1.bf16.msra.mxu0 %v230
    %296 = vmatprep.subr.bf16.mxu0 %v233
    %297 = vmatpush1.bf16.msra.mxu0 %v232
    %298 = vmatprep.subr.bf16.mxu0 %v235
    %299 = vmatpush1.bf16.msra.mxu0 %v234
    %300 = vmatprep.subr.bf16.mxu0 %v237
    %301 = vmatpush1.bf16.msra.mxu0 %v236
    %302 = vmatprep.subr.bf16.mxu0 %v239
    %303 = vmatpush1.bf16.msra.mxu0 %v238
    %304 = vmatprep.subr.bf16.mxu0 %v241
    %305 = vmatpush1.bf16.msra.mxu0 %v240
    %306 = vmatprep.subr.bf16.mxu0 %v243
    %307 = vmatpush1.bf16.msra.mxu0 %v242
    %308 = vmatprep.subr.bf16.mxu0 %v245
    %309 = vmatpush1.bf16.msra.mxu0 %v244
    %310 = vmatprep.subr.bf16.mxu0 %v247
    %311 = vmatpush1.bf16.msra.mxu0 %v246
    %312 = vmatprep.subr.bf16.mxu0 %v249
    %313 = vmatpush1.bf16.msra.mxu0 %v248
    %314 = vmatprep.subr.bf16.mxu0 %v251
    %315 = vmatpush1.bf16.msra.mxu0 %v250
    %316 = vmatprep.subr.bf16.mxu0 %v253
    %317 = vmatpush1.bf16.msra.mxu0 %v252
    %318 = vmatprep.subr.bf16.mxu0 %v255
    %319 = vmatpush1.bf16.msra.mxu0 %v254
    %320 = vmatprep.mubr.bf16.mxu0 %v95
    %321 = vmatmul.mubr.bf16.gmra.mrb[0].mxu0 %v94
    %v322 = vpop.f32.mrb[0].mxu0
    %v323 = vadd.f32 0.0, %v322
    %v324 = vpop.f32.mrb[0].mxu0
    %v325 = vadd.f32 0.0, %v324
    %v326 = vpop.f32.mrb[0].mxu0
    %v327 = vpop.f32.mrb[0].mxu0
    %328 = vdwg.mxu0
    %v329 = vmax.f32 %v323, 0.0
    %v330 = vmax.f32 %v325, 0.0
    %v331 = vld [vmem:[%s3] sm:$0x3]
    %v332 = vunpack.c.l.bf16 %v331
    %v334 = vlaneseq
    %v335 = vshrl.u32 %v334, 7
    %v336 = vsub.s32 0, %v335
    %v337 = vrot.slane %v332, %v336
    %v338 = vlaneseq
    %v339 = vshrl.u32 %v338, 7
    %v340 = vsub.s32 2, %v339
    %v341 = vrot.slane %v332, %v340
    %v344 = vlaneseq
    %v345 = vshrl.u32 %v344, 7
    %v346 = vsub.s32 0, %v345
    %v347 = vrot.slane %v337, %v346
    %v348 = vlaneseq
    %v349 = vshrl.u32 %v348, 7
    %v350 = vsub.s32 0, %v349
    %v351 = vrot.slane %v341, %v350
    %v352 = vmul.f32 %v329, %v347
    %v353 = vmul.f32 %v330, %v351
    %v354 = vadd.f32 %v352, %v353
    %355 = vadd.xlane.f32.xlu0 %v354
    %v356 = vpop.xlane.xlu0 %355
    %v358 = vlaneseq
    %v359 = vand.u32 %v358, 127
    %v360 = vlaneseq
    %v361 = vshrl.u32 %v360, 7
    %v362 = vsub.s32 %v359, %v361
    %v363 = vrot.slane %v356, %v362
    %vm365 = vcmask 57344
    %366 = vst.msk [vmem:[#allocation5] sm:$0x1] %vm365, %v363
    // Predicated region
    $region22: #{critic_forward.1} parent=1 // pred_check
      _
    $region23: #{critic_forward.1} parent=1 // pred_check_branch
      %368 = sbr.rel (0) target = $region25
    $region24: #{critic_forward.1} parent=1 // pred_region
      %s370 = ssub.s32 16, 16
      %371 = vsyncadd [#allocation4], %s370
      %s373 = sshll.u32 [#allocation5], 4
      %s374 = int_to_ptr.vmem [resolvable:$true] %s373
      %376 = dma.vmem_to_hbm [thread:$0]  %s374, 16, %s4, [#allocation4]
    $region25: #{critic_forward.1} parent=1 // pred_fallthru
      _
    // Predicated region
    $region26: #{critic_forward.1} parent=1 // pred_check
      _
    $region27: #{critic_forward.1} parent=1 // pred_check_branch
      %378 = sbr.rel (0) target = $region29
    $region28: #{critic_forward.1} parent=1 // pred_region
      %379 = dma.done [#allocation4], 16
    $region29: #{critic_forward.1} parent=1 // pred_fallthru
      _
    %380 = vsyncpa [#allocation3], 1
    %381 = vsyncpa [#allocation4], 1

</llo_original>
